<compile_context>
chip_gen: v7x
topology: tpu7x:2x2x1
jax: 0.10.0
libtpu: 0.0.40
codegen_flags: <defaults>
</compile_context>

<pallas_src>
import functools

import jax
import jax.numpy as jnp
from jax.experimental import pallas as pl
from jax.experimental.pallas import tpu as pltpu


def _laplace_kernel(x_ref, top_ref, bot_ref, o_ref, *, w_true):
    # x_ref:   (C_in, TH, Wp)  current row tile (batch dim squeezed away)
    # top_ref: (C_in, 8,  Wp)  8-row block whose LAST row is the row above the tile
    # bot_ref: (C_in, 8,  Wp)  8-row block whose FIRST row is the row below the tile
    # o_ref:   (C_out, TH, Wp)
    t = pl.program_id(1)
    num_t = pl.num_programs(1)
    c_out, th, wp = o_ref.shape
    f32 = jnp.float32

    # Channel sum (conv weight is identical for every (out, in) channel pair).
    s = jnp.sum(x_ref[...].astype(f32), axis=0)                  # (TH, Wp)
    top = jnp.sum(top_ref[:, 7:8, :].astype(f32), axis=0)        # (1, Wp)
    bot = jnp.sum(bot_ref[:, 0:1, :].astype(f32), axis=0)        # (1, Wp)
    # Zero padding at the image top / bottom (halo blocks are clamped there).
    top = jnp.where(t == 0, 0.0, top)
    bot = jnp.where(t == num_t - 1, 0.0, bot)

    def h3(v):
        # Horizontal 3-tap box sum with zero padding at columns 0 and W-1,
        # built from lane rolls (XLU) + iota masks (VPU).  pltpu.roll only
        # accepts non-negative shifts, so "shift by -1" is written as the
        # modular-equivalent positive shift (width - 1).
        width = v.shape[1]
        cid = jax.lax.broadcasted_iota(jnp.int32, v.shape, 1)
        left = jnp.where(cid == 0, 0.0, pltpu.roll(v, shift=1, axis=1))
        right = jnp.where(cid == w_true - 1, 0.0,
                          pltpu.roll(v, shift=width - 1, axis=1))
        return left + v + right

    mid3 = h3(s)           # 3-tap sum of each row of the tile
    top3 = h3(top)         # 3-tap sum of the row above the tile
    bot3 = h3(bot)         # 3-tap sum of the row below the tile

    rid = jax.lax.broadcasted_iota(jnp.int32, (th, wp), 0)
    up3 = jnp.where(rid == 0, top3, pltpu.roll(mid3, shift=1, axis=0))
    dn3 = jnp.where(rid == th - 1, bot3, pltpu.roll(mid3, shift=th - 1, axis=0))

    # kernel4 = (3x3 box of ones) - 9 * center
    res = (up3 + mid3 + dn3 - 9.0 * s).astype(o_ref.dtype)
    for c in range(c_out):          # every output channel is identical
        o_ref[c] = res


def _round_up(v, m):
    return (v + m - 1) // m * m


def _pick_tile_rows(h_pad, bytes_per_row, target_bytes=4 * 1024 * 1024):
    """Largest multiple-of-8 divisor of h_pad whose (in+out) row tile stays
    under ~4 MiB, so double-buffered VMEM stays comfortably inside limits."""
    th_cap = max(8, min(h_pad, (target_bytes // max(bytes_per_row, 1)) // 8 * 8))
    th = 8
    for cand in range(8, th_cap + 1, 8):
        if h_pad % cand == 0:
            th = cand
    return th


def laplas_gradient(x, outdim, tile_rows=None):
    """LapLasGradient.forward: fixed kernel4 3x3 conv, padding=1, no bias.

    x: (N, indim, H, W)  ->  (N, outdim, H, W)
    """
    n, c_in, h, w = x.shape
    itemsize = jnp.dtype(x.dtype).itemsize

    # Pad so row tiles are sublane aligned (H % 8 == 0) and output stores are
    # lane dense (W % 128 == 0).  Zero padding matches the conv's zero padding
    # on the bottom/right; padded rows/cols are sliced off after the call.
    h_pad = _round_up(max(h, 8), 8)
    w_pad = _round_up(max(w, 128), 128)
    if (h_pad, w_pad) != (h, w):
        xp = jnp.pad(x, ((0, 0), (0, 0), (0, h_pad - h), (0, w_pad - w)))
    else:
        xp = x

    bytes_per_row = (c_in + outdim) * w_pad * itemsize
    if tile_rows and tile_rows % 8 == 0 and h_pad % tile_rows == 0:
        th = tile_rows
    else:
        th = _pick_tile_rows(h_pad, bytes_per_row)
    num_tiles = h_pad // th
    th8 = th // 8
    nb8 = h_pad // 8

    kernel = functools.partial(_laplace_kernel, w_true=w)

    x_spec = pl.BlockSpec((pl.Squeezed(), c_in, th, w_pad),
                          lambda i, t: (i, 0, t, 0))
    # 8-row halo blocks (tiny): last row of `top` is the row just above the
    # tile, first row of `bot` the row just below (clamped + masked at edges).
    top_spec = pl.BlockSpec((pl.Squeezed(), c_in, 8, w_pad),
                            lambda i, t: (i, 0, jnp.maximum(t * th8 - 1, 0), 0))
    bot_spec = pl.BlockSpec((pl.Squeezed(), c_in, 8, w_pad),
                            lambda i, t: (i, 0, jnp.minimum((t + 1) * th8, nb8 - 1), 0))
    o_spec = pl.BlockSpec((pl.Squeezed(), outdim, th, w_pad),
                          lambda i, t: (i, 0, t, 0))

    flops = int(n * h_pad * w_pad * (c_in + 12))
    bytes_accessed = int(n * h_pad * w_pad * (c_in + outdim) * itemsize
                         + n * num_tiles * 2 * c_in * 8 * w_pad * itemsize)

    out = pl.pallas_call(
        kernel,
        out_shape=jax.ShapeDtypeStruct((n, outdim, h_pad, w_pad), x.dtype),
        grid=(n, num_tiles),
        in_specs=[x_spec, top_spec, bot_spec],
        out_specs=o_spec,
        compiler_params=pltpu.CompilerParams(
            dimension_semantics=("parallel", "parallel"),
            vmem_limit_bytes=32 * 1024 * 1024),
        cost_estimate=pl.CostEstimate(
            flops=flops, transcendentals=0, bytes_accessed=bytes_accessed),
    )(xp, xp, xp)

    if (h_pad, w_pad) != (h, w):
        out = out[:, :, :h, :w]
    return out


def _reference(x, outdim):
    """Plain-JAX reference for LapLasGradient.forward (zero-padded conv)."""
    s = jnp.sum(x.astype(jnp.float32), axis=1)                    # (N, H, W)
    n, h, w = s.shape
    sp = jnp.pad(s, ((0, 0), (1, 1), (1, 1)))
    tot = jnp.zeros_like(s)
    for du in range(3):
        for dv in range(3):
            tot = tot + sp[:, du:du + h, dv:dv + w]
    plane = tot - 9.0 * s
    return jnp.broadcast_to(plane[:, None, :, :], (n, outdim, h, w)).astype(x.dtype)


if __name__ == "__main__":
    key = jax.random.PRNGKey(0)
    k1, k2 = jax.random.split(key)

    # Primary small test: batch=2, indim=outdim=4, 16x16 images.
    x = jax.random.normal(k1, (2, 4, 16, 16), dtype=jnp.float32)
    out = jax.block_until_ready(laplas_gradient(x, outdim=4))
    ref = _reference(x, 4)
    assert out.shape == (2, 4, 16, 16)
    assert jnp.allclose(out, ref, atol=1e-4, rtol=1e-4), "mismatch vs reference (test 1)"

    # Second test: unaligned H/W, indim != outdim, forced multi-tile grid so
    # the halo blocks and padding paths are exercised.
    x2 = jax.random.normal(k2, (1, 3, 36, 40), dtype=jnp.float32)
    out2 = jax.block_until_ready(laplas_gradient(x2, outdim=5, tile_rows=8))
    ref2 = _reference(x2, 5)
    assert out2.shape == (1, 5, 36, 40)
    assert jnp.allclose(out2, ref2, atol=1e-4, rtol=1e-4), "mismatch vs reference (test 2)"

    print("KERNEL_OK")
</pallas_src>

<mosaic_0001>
module attributes {stable_mosaic.version = 11 : i64} {
  func.func @_laplace_kernel(%arg0: i32, %arg1: i32, %arg2: memref<1x4x16x128xf32, #tpu.memory_space<vmem>>, %arg3: memref<1x4x8x128xf32, #tpu.memory_space<vmem>>, %arg4: memref<1x4x8x128xf32, #tpu.memory_space<vmem>>, %arg5: memref<1x4x16x128xf32, #tpu.memory_space<vmem>>) attributes {dimension_semantics = [#tpu.dimension_semantics<parallel>, #tpu.dimension_semantics<parallel>], iteration_bounds = array<i64: 2, 1>, scalar_prefetch = 0 : i64, scratch_operands = 0 : i64, tpu.core_type = #tpu.core_type<tc>, window_params = [{transform_indices = @transform_0, window_bounds = array<i64: 1, 4, 16, 128>}, {transform_indices = @transform_1, window_bounds = array<i64: 1, 4, 8, 128>}, {transform_indices = @transform_2, window_bounds = array<i64: 1, 4, 8, 128>}, {transform_indices = @transform_3, window_bounds = array<i64: 1, 4, 16, 128>}]} {
    %c0 = arith.constant 0 : index
    %c0_0 = arith.constant 0 : index
    %c0_1 = arith.constant 0 : index
    %c0_2 = arith.constant 0 : index
    %0 = vector.load %arg2[%c0, %c0_0, %c0_1, %c0_2] : memref<1x4x16x128xf32, #tpu.memory_space<vmem>>, vector<1x4x16x128xf32>
    %1 = vector.shape_cast %0 : vector<1x4x16x128xf32> to vector<4x16x128xf32>
    %cst = arith.constant dense<0.000000e+00> : vector<16x128xf32>
    %2 = vector.multi_reduction <add>, %1, %cst [0] : vector<4x16x128xf32> to vector<16x128xf32>
    %c0_3 = arith.constant 0 : index
    %c0_4 = arith.constant 0 : index
    %c7 = arith.constant 7 : index
    %c0_5 = arith.constant 0 : index
    %3 = vector.load %arg3[%c0_3, %c0_4, %c7, %c0_5] : memref<1x4x8x128xf32, #tpu.memory_space<vmem>>, vector<1x4x1x128xf32>
    %4 = vector.shape_cast %3 : vector<1x4x1x128xf32> to vector<4x1x128xf32>
    %cst_6 = arith.constant dense<0.000000e+00> : vector<1x128xf32>
    %5 = vector.multi_reduction <add>, %4, %cst_6 [0] : vector<4x1x128xf32> to vector<1x128xf32>
    %c0_7 = arith.constant 0 : index
    %c0_8 = arith.constant 0 : index
    %c0_9 = arith.constant 0 : index
    %c0_10 = arith.constant 0 : index
    %6 = vector.load %arg4[%c0_7, %c0_8, %c0_9, %c0_10] : memref<1x4x8x128xf32, #tpu.memory_space<vmem>>, vector<1x4x1x128xf32>
    %7 = vector.shape_cast %6 : vector<1x4x1x128xf32> to vector<4x1x128xf32>
    %cst_11 = arith.constant dense<0.000000e+00> : vector<1x128xf32>
    %8 = vector.multi_reduction <add>, %7, %cst_11 [0] : vector<4x1x128xf32> to vector<1x128xf32>
    %c0_i32 = arith.constant 0 : i32
    %9 = arith.cmpi eq, %arg1, %c0_i32 : i32
    %cst_12 = arith.constant 0.000000e+00 : f32
    %10 = vector.broadcast %cst_12 : f32 to vector<1x128xf32>
    %11 = arith.select %9, %10, %5 : vector<1x128xf32>
    %c0_i32_13 = arith.constant 0 : i32
    %12 = arith.cmpi eq, %arg1, %c0_i32_13 : i32
    %cst_14 = arith.constant 0.000000e+00 : f32
    %13 = vector.broadcast %cst_14 : f32 to vector<1x128xf32>
    %14 = arith.select %12, %13, %8 : vector<1x128xf32>
    %15 = tpu.iota {dimensions = array<i32: 1>} : vector<16x128xi32>
    %c0_i32_15 = arith.constant 0 : i32
    %16 = vector.broadcast %c0_i32_15 : i32 to vector<16x128xi32>
    %17 = arith.cmpi eq, %15, %16 : vector<16x128xi32>
    %c1_i32 = arith.constant 1 : i32
    %18 = tpu.dynamic_rotate %2 by %c1_i32 dim 1 : vector<16x128xf32>, i32 -> vector<16x128xf32>
    %cst_16 = arith.constant 0.000000e+00 : f32
    %19 = vector.broadcast %cst_16 : f32 to vector<16x128xf32>
    %20 = arith.select %17, %19, %18 : vector<16x128xi1>, vector<16x128xf32>
    %c15_i32 = arith.constant 15 : i32
    %21 = vector.broadcast %c15_i32 : i32 to vector<16x128xi32>
    %22 = arith.cmpi eq, %15, %21 : vector<16x128xi32>
    %c127_i32 = arith.constant 127 : i32
    %23 = tpu.dynamic_rotate %2 by %c127_i32 dim 1 : vector<16x128xf32>, i32 -> vector<16x128xf32>
    %cst_17 = arith.constant 0.000000e+00 : f32
    %24 = vector.broadcast %cst_17 : f32 to vector<16x128xf32>
    %25 = arith.select %22, %24, %23 : vector<16x128xi1>, vector<16x128xf32>
    %26 = arith.addf %20, %2 : vector<16x128xf32>
    %27 = arith.addf %26, %25 : vector<16x128xf32>
    %28 = tpu.iota {dimensions = array<i32: 1>} : vector<1x128xi32>
    %c0_i32_18 = arith.constant 0 : i32
    %29 = vector.broadcast %c0_i32_18 : i32 to vector<1x128xi32>
    %30 = arith.cmpi eq, %28, %29 : vector<1x128xi32>
    %c1_i32_19 = arith.constant 1 : i32
    %31 = tpu.dynamic_rotate %11 by %c1_i32_19 dim 1 : vector<1x128xf32>, i32 -> vector<1x128xf32>
    %cst_20 = arith.constant 0.000000e+00 : f32
    %32 = vector.broadcast %cst_20 : f32 to vector<1x128xf32>
    %33 = arith.select %30, %32, %31 : vector<1x128xi1>, vector<1x128xf32>
    %c15_i32_21 = arith.constant 15 : i32
    %34 = vector.broadcast %c15_i32_21 : i32 to vector<1x128xi32>
    %35 = arith.cmpi eq, %28, %34 : vector<1x128xi32>
    %c127_i32_22 = arith.constant 127 : i32
    %36 = tpu.dynamic_rotate %11 by %c127_i32_22 dim 1 : vector<1x128xf32>, i32 -> vector<1x128xf32>
    %cst_23 = arith.constant 0.000000e+00 : f32
    %37 = vector.broadcast %cst_23 : f32 to vector<1x128xf32>
    %38 = arith.select %35, %37, %36 : vector<1x128xi1>, vector<1x128xf32>
    %39 = arith.addf %33, %11 : vector<1x128xf32>
    %40 = arith.addf %39, %38 : vector<1x128xf32>
    %41 = tpu.iota {dimensions = array<i32: 1>} : vector<1x128xi32>
    %c0_i32_24 = arith.constant 0 : i32
    %42 = vector.broadcast %c0_i32_24 : i32 to vector<1x128xi32>
    %43 = arith.cmpi eq, %41, %42 : vector<1x128xi32>
    %c1_i32_25 = arith.constant 1 : i32
    %44 = tpu.dynamic_rotate %14 by %c1_i32_25 dim 1 : vector<1x128xf32>, i32 -> vector<1x128xf32>
    %cst_26 = arith.constant 0.000000e+00 : f32
    %45 = vector.broadcast %cst_26 : f32 to vector<1x128xf32>
    %46 = arith.select %43, %45, %44 : vector<1x128xi1>, vector<1x128xf32>
    %c15_i32_27 = arith.constant 15 : i32
    %47 = vector.broadcast %c15_i32_27 : i32 to vector<1x128xi32>
    %48 = arith.cmpi eq, %41, %47 : vector<1x128xi32>
    %c127_i32_28 = arith.constant 127 : i32
    %49 = tpu.dynamic_rotate %14 by %c127_i32_28 dim 1 : vector<1x128xf32>, i32 -> vector<1x128xf32>
    %cst_29 = arith.constant 0.000000e+00 : f32
    %50 = vector.broadcast %cst_29 : f32 to vector<1x128xf32>
    %51 = arith.select %48, %50, %49 : vector<1x128xi1>, vector<1x128xf32>
    %52 = arith.addf %46, %14 : vector<1x128xf32>
    %53 = arith.addf %52, %51 : vector<1x128xf32>
    %54 = tpu.iota {dimensions = array<i32: 0>} : vector<16x128xi32>
    %c0_i32_30 = arith.constant 0 : i32
    %55 = vector.broadcast %c0_i32_30 : i32 to vector<16x128xi32>
    %56 = arith.cmpi eq, %54, %55 : vector<16x128xi32>
    %c1_i32_31 = arith.constant 1 : i32
    %57 = tpu.dynamic_rotate %27 by %c1_i32_31 dim 0 : vector<16x128xf32>, i32 -> vector<16x128xf32>
    %58 = vector.shape_cast %40 : vector<1x128xf32> to vector<1x128xf32>
    %59 = vector.broadcast %58 : vector<1x128xf32> to vector<16x128xf32>
    %60 = arith.select %56, %59, %57 : vector<16x128xi1>, vector<16x128xf32>
    %c15_i32_32 = arith.constant 15 : i32
    %61 = vector.broadcast %c15_i32_32 : i32 to vector<16x128xi32>
    %62 = arith.cmpi eq, %54, %61 : vector<16x128xi32>
    %c15_i32_33 = arith.constant 15 : i32
    %63 = tpu.dynamic_rotate %27 by %c15_i32_33 dim 0 : vector<16x128xf32>, i32 -> vector<16x128xf32>
    %64 = vector.shape_cast %53 : vector<1x128xf32> to vector<1x128xf32>
    %65 = vector.broadcast %64 : vector<1x128xf32> to vector<16x128xf32>
    %66 = arith.select %62, %65, %63 : vector<16x128xi1>, vector<16x128xf32>
    %67 = arith.addf %60, %27 : vector<16x128xf32>
    %68 = arith.addf %67, %66 : vector<16x128xf32>
    %cst_34 = arith.constant 9.000000e+00 : f32
    %69 = vector.broadcast %cst_34 : f32 to vector<16x128xf32>
    %70 = arith.mulf %69, %2 : vector<16x128xf32>
    %71 = arith.subf %68, %70 : vector<16x128xf32>
    %c0_35 = arith.constant 0 : index
    %c0_36 = arith.constant 0 : index
    %c0_37 = arith.constant 0 : index
    %c0_38 = arith.constant 0 : index
    %72 = vector.load %arg5[%c0_35, %c0_36, %c0_37, %c0_38] : memref<1x4x16x128xf32, #tpu.memory_space<vmem>>, vector<1x1x16x128xf32>
    %73 = vector.shape_cast %72 : vector<1x1x16x128xf32> to vector<16x128xf32>
    %74 = vector.shape_cast %71 : vector<16x128xf32> to vector<1x1x16x128xf32>
    tpu.vector_store %arg5[%c0_35, %c0_36, %c0_37, %c0_38], %74 {strides = array<i32>} : memref<1x4x16x128xf32, #tpu.memory_space<vmem>>, vector<1x1x16x128xf32>,
    %c0_39 = arith.constant 0 : index
    %c1 = arith.constant 1 : index
    %c0_40 = arith.constant 0 : index
    %c0_41 = arith.constant 0 : index
    %75 = vector.load %arg5[%c0_39, %c1, %c0_40, %c0_41] : memref<1x4x16x128xf32, #tpu.memory_space<vmem>>, vector<1x1x16x128xf32>
    %76 = vector.shape_cast %75 : vector<1x1x16x128xf32> to vector<16x128xf32>
    %77 = vector.shape_cast %71 : vector<16x128xf32> to vector<1x1x16x128xf32>
    tpu.vector_store %arg5[%c0_39, %c1, %c0_40, %c0_41], %77 {strides = array<i32>} : memref<1x4x16x128xf32, #tpu.memory_space<vmem>>, vector<1x1x16x128xf32>,
    %c0_42 = arith.constant 0 : index
    %c2 = arith.constant 2 : index
    %c0_43 = arith.constant 0 : index
    %c0_44 = arith.constant 0 : index
    %78 = vector.load %arg5[%c0_42, %c2, %c0_43, %c0_44] : memref<1x4x16x128xf32, #tpu.memory_space<vmem>>, vector<1x1x16x128xf32>
    %79 = vector.shape_cast %78 : vector<1x1x16x128xf32> to vector<16x128xf32>
    %80 = vector.shape_cast %71 : vector<16x128xf32> to vector<1x1x16x128xf32>
    tpu.vector_store %arg5[%c0_42, %c2, %c0_43, %c0_44], %80 {strides = array<i32>} : memref<1x4x16x128xf32, #tpu.memory_space<vmem>>, vector<1x1x16x128xf32>,
    %c0_45 = arith.constant 0 : index
    %c3 = arith.constant 3 : index
    %c0_46 = arith.constant 0 : index
    %c0_47 = arith.constant 0 : index
    %81 = vector.load %arg5[%c0_45, %c3, %c0_46, %c0_47] : memref<1x4x16x128xf32, #tpu.memory_space<vmem>>, vector<1x1x16x128xf32>
    %82 = vector.shape_cast %81 : vector<1x1x16x128xf32> to vector<16x128xf32>
    %83 = vector.shape_cast %71 : vector<16x128xf32> to vector<1x1x16x128xf32>
    tpu.vector_store %arg5[%c0_45, %c3, %c0_46, %c0_47], %83 {strides = array<i32>} : memref<1x4x16x128xf32, #tpu.memory_space<vmem>>, vector<1x1x16x128xf32>,
    return
  }
  func.func @transform_0(%arg0: i32, %arg1: i32) -> (i32, i32, i32, i32) {
    %c0_i32 = arith.constant 0 : i32
    %c0_i32_0 = arith.constant 0 : i32
    %c0_i32_1 = arith.constant 0 : i32
    return %arg0, %c0_i32, %arg1, %c0_i32_0 : i32, i32, i32, i32
  }
  func.func @transform_1(%arg0: i32, %arg1: i32) -> (i32, i32, i32, i32) {
    %c2_i32 = arith.constant 2 : i32
    %0 = arith.muli %arg1, %c2_i32 : i32
    %c1_i32 = arith.constant 1 : i32
    %1 = arith.subi %0, %c1_i32 : i32
    %c0_i32 = arith.constant 0 : i32
    %2 = arith.maxsi %1, %c0_i32 : i32
    %c0_i32_0 = arith.constant 0 : i32
    %c0_i32_1 = arith.constant 0 : i32
    %c0_i32_2 = arith.constant 0 : i32
    return %arg0, %c0_i32_0, %2, %c0_i32_1 : i32, i32, i32, i32
  }
  func.func @transform_2(%arg0: i32, %arg1: i32) -> (i32, i32, i32, i32) {
    %c1_i32 = arith.constant 1 : i32
    %0 = arith.addi %arg1, %c1_i32 : i32
    %c2_i32 = arith.constant 2 : i32
    %1 = arith.muli %0, %c2_i32 : i32
    %c1_i32_0 = arith.constant 1 : i32
    %2 = arith.minsi %1, %c1_i32_0 : i32
    %c0_i32 = arith.constant 0 : i32
    %c0_i32_1 = arith.constant 0 : i32
    %c0_i32_2 = arith.constant 0 : i32
    return %arg0, %c0_i32, %2, %c0_i32_1 : i32, i32, i32, i32
  }
  func.func @transform_3(%arg0: i32, %arg1: i32) -> (i32, i32, i32, i32) {
    %c0_i32 = arith.constant 0 : i32
    %c0_i32_0 = arith.constant 0 : i32
    %c0_i32_1 = arith.constant 0 : i32
    return %arg0, %c0_i32, %arg1, %c0_i32_0 : i32, i32, i32, i32
  }
}

</mosaic_0001>

<llo_original>
// kernel: tpu_custom_call.1
$region0: #{tpu_custom_call.1}
  #allocation0 [shape = 'u32[]', space=smem, size = 0x4, offset = 0x4, fixed_abs, tag = 'smem constant byte address 0x4 - core index']
  #allocation1 [shape = 'u32[144,128]{1,0:T(1,128)}', space=vmem, size = 0x12000, scoped, tag = 'internal scratch']
  %s0 = inlined_call_operand.hbm [shape: f32[2,4,16,128], index: 0, kind: input, shape index: {}]
  %s1 = inlined_call_operand.hbm [shape: f32[2,4,16,128], index: 1, kind: input, shape index: {}]
  %s2 = inlined_call_operand.hbm [shape: f32[2,4,16,128], index: 2, kind: input, shape index: {}]
  %s3 = inlined_call_operand.hbm [shape: f32[2,4,16,128], index: 3, kind: output, shape index: {}]
  %s4 = sld [smem:[#allocation0]]
  $region57: #{tpu_custom_call.1} parent=0
    _
  %s6 = ssub.s32 1, %s4
  %s7 = scalar_select 0, %s6, %s4
  $region1: #{tpu_custom_call.1} parent=0
    #allocation2 [shape = 'u8[65536]{0}', space=vmem, size = 0x10000, scoped, tag = 'input window, operand 0']
    #allocation3 [shape = 's32[2]{0}', space=sflag, size = 0x8, scoped, tag = 'scoped memory for tpu_custom_call.1']
    #allocation4 [shape = 's32[2]{0}', space=sflag, size = 0x8, scoped, tag = 'scoped memory for tpu_custom_call.1']
    #allocation5 [shape = 'u8[32768]{0}', space=vmem, size = 0x8000, scoped, tag = 'input window, operand 1']
    #allocation6 [shape = 's32[2]{0}', space=sflag, size = 0x8, scoped, tag = 'scoped memory for tpu_custom_call.1']
    #allocation7 [shape = 'u8[32768]{0}', space=vmem, size = 0x8000, scoped, tag = 'input window, operand 2']
    #allocation8 [shape = 'u8[65536]{0}', space=vmem, size = 0x10000, scoped, tag = 'output window, operand 0']
    %8 = vsyncpa [#allocation3], 0
    %s9 = scalar_lea.sflag [#allocation3], 1
    %10 = vsyncpa %s9, 0
    %11 = vsyncpa [#allocation6], 0
    %s12 = scalar_lea.sflag [#allocation6], 1
    %13 = vsyncpa %s12, 0
    %14 = vsyncpa [#allocation4], 0
    %s15 = scalar_lea.sflag [#allocation4], 1
    %16 = vsyncpa %s15, 0
    loop: start=0, step=1, limit=4
    $region2: #{tpu_custom_call.1} parent=1 // loop_pre_header
      _
    $region3: #{tpu_custom_call.1} parent=1 // loop_header
      %s18 = sphi 0, %s22
      %p19 = scmp.ge.s32.totalorder %s18, 4
      %s25 = sphi 0, %s37
      %s26 = sphi 0, %s33
      %s27 = sphi 0, %s25
      %s28 = sphi 0, %s26
      %s29 = sphi 0, %s27
      %s30 = sphi 0, %s28
      %s42 = sphi 0, %s44
      %s45 = sphi 0, %s42
      %s46 = sphi 0, %s45
      %s62 = sphi 0, %s46
      %s78 = sphi 0, %s80
      %s81 = sphi 0, %s78
      %s82 = sphi 0, %s81
      %s98 = sphi 0, %s82
      %s114 = sphi 0, %s116
      %s117 = sphi 0, %s114
      %s118 = sphi 0, %s117
      %s134 = sphi 0, %s118
      %s142 = sphi 0, %s144
      %s145 = sphi 0, %s142
      %s146 = sphi 0, %s145
      %s162 = sphi 0, %s146
    $region4: #{tpu_custom_call.1} parent=1 // loop_header_branch
      %21 = sbr.rel (%p19) target = $region8
    $region5: #{tpu_custom_call.1} parent=1 // loop_body
      %s23 = ssub.s32 %s18, 1
      %s24 = ssub.s32 %s18, 2
      %s31 = sadd.s32 1, %s26
      %p32 = scmp.ge.s32.totalorder %s31, 1
      %s33 = scalar_select %p32, 0, %s31
      %s34 = sadd.s32 1, %s25
      %s35 = scalar_select %p32, %s34, %s25
      %p36 = scmp.ge.s32.totalorder %s35, 2
      %s37 = scalar_select %p36, 0, %s35
      %s38 = ssub.s32 %s25, %s37
      %s39 = ssub.s32 %s26, %s33
      %s40 = sor.u32 %s38, %s39
      %p41 = scmp.eq.s32.totalorder %s40, 0
      %s43 = sadd.s32 %s42, 1
      %s44 = scalar_select %p41, %s42, %s43
      %p47 = pneg %p41
      %p48 = scmp.eq.s32.totalorder %s18, 1
      %p49 = por %p47, %p48
      %p50 = scmp.ne.s32.totalorder %s42, %s45
      %p51 = scmp.eq.s32.totalorder %s18, 0
      %p52 = por %p50, %p51
      %p53 = scmp.ne.s32.totalorder %s42, %s45
      %p54 = scmp.eq.s32.totalorder %s23, 1
      %p55 = por %p53, %p54
      %p56 = scmp.ne.s32.totalorder %s45, %s46
      %p57 = scmp.eq.s32.totalorder %s23, 0
      %p58 = por %p56, %p57
      %p59 = scmp.ne.s32.totalorder %s45, %s46
      %p60 = scmp.eq.s32.totalorder %s24, 1
      %p61 = por %p59, %p60
      %p63 = scmp.ne.s32.totalorder %s46, %s62
      %p64 = scmp.eq.s32.totalorder %s24, 0
      %p65 = por %p63, %p64
      %s66 = smul.u32 %s26, 2
      %s67 = ssub.s32 %s66, 1
      %p68 = scmp.gt.s32.totalorder %s67, 0
      %s69 = scalar_select %p68, %s67, 0
      %s70 = smul.u32 %s33, 2
      %s71 = ssub.s32 %s70, 1
      %p72 = scmp.gt.s32.totalorder %s71, 0
      %s73 = scalar_select %p72, %s71, 0
      %s74 = ssub.s32 %s25, %s37
      %s75 = ssub.s32 %s69, %s73
      %s76 = sor.u32 %s74, %s75
      %p77 = scmp.eq.s32.totalorder %s76, 0
      %s79 = sadd.s32 %s78, 1
      %s80 = scalar_select %p77, %s78, %s79
      %p83 = pneg %p77
      %p84 = scmp.eq.s32.totalorder %s18, 1
      %p85 = por %p83, %p84
      %p86 = scmp.ne.s32.totalorder %s78, %s81
      %p87 = scmp.eq.s32.totalorder %s18, 0
      %p88 = por %p86, %p87
      %p89 = scmp.ne.s32.totalorder %s78, %s81
      %p90 = scmp.eq.s32.totalorder %s23, 1
      %p91 = por %p89, %p90
      %p92 = scmp.ne.s32.totalorder %s81, %s82
      %p93 = scmp.eq.s32.totalorder %s23, 0
      %p94 = por %p92, %p93
      %p95 = scmp.ne.s32.totalorder %s81, %s82
      %p96 = scmp.eq.s32.totalorder %s24, 1
      %p97 = por %p95, %p96
      %p99 = scmp.ne.s32.totalorder %s82, %s98
      %p100 = scmp.eq.s32.totalorder %s24, 0
      %p101 = por %p99, %p100
      %s102 = sadd.s32 %s26, 1
      %s103 = smul.u32 %s102, 2
      %p104 = scmp.lt.s32.totalorder %s103, 1
      %s105 = scalar_select %p104, %s103, 1
      %s106 = sadd.s32 %s33, 1
      %s107 = smul.u32 %s106, 2
      %p108 = scmp.lt.s32.totalorder %s107, 1
      %s109 = scalar_select %p108, %s107, 1
      %s110 = ssub.s32 %s25, %s37
      %s111 = ssub.s32 %s105, %s109
      %s112 = sor.u32 %s110, %s111
      %p113 = scmp.eq.s32.totalorder %s112, 0
      %s115 = sadd.s32 %s114, 1
      %s116 = scalar_select %p113, %s114, %s115
      %p119 = pneg %p113
      %p120 = scmp.eq.s32.totalorder %s18, 1
      %p121 = por %p119, %p120
      %p122 = scmp.ne.s32.totalorder %s114, %s117
      %p123 = scmp.eq.s32.totalorder %s18, 0
      %p124 = por %p122, %p123
      %p125 = scmp.ne.s32.totalorder %s114, %s117
      %p126 = scmp.eq.s32.totalorder %s23, 1
      %p127 = por %p125, %p126
      %p128 = scmp.ne.s32.totalorder %s117, %s118
      %p129 = scmp.eq.s32.totalorder %s23, 0
      %p130 = por %p128, %p129
      %p131 = scmp.ne.s32.totalorder %s117, %s118
      %p132 = scmp.eq.s32.totalorder %s24, 1
      %p133 = por %p131, %p132
      %p135 = scmp.ne.s32.totalorder %s118, %s134
      %p136 = scmp.eq.s32.totalorder %s24, 0
      %p137 = por %p135, %p136
      %s138 = ssub.s32 %s25, %s37
      %s139 = ssub.s32 %s26, %s33
      %s140 = sor.u32 %s138, %s139
      %p141 = scmp.eq.s32.totalorder %s140, 0
      %s143 = sadd.s32 %s142, 1
      %s144 = scalar_select %p141, %s142, %s143
      %p147 = pneg %p141
      %p148 = scmp.eq.s32.totalorder %s18, 1
      %p149 = por %p147, %p148
      %p150 = scmp.ne.s32.totalorder %s142, %s145
      %p151 = scmp.eq.s32.totalorder %s18, 0
      %p152 = por %p150, %p151
      %p153 = scmp.ne.s32.totalorder %s142, %s145
      %p154 = scmp.eq.s32.totalorder %s23, 1
      %p155 = por %p153, %p154
      %p156 = scmp.ne.s32.totalorder %s145, %s146
      %p157 = scmp.eq.s32.totalorder %s23, 0
      %p158 = por %p156, %p157
      %p159 = scmp.ne.s32.totalorder %s145, %s146
      %p160 = scmp.eq.s32.totalorder %s24, 1
      %p161 = por %p159, %p160
      %p163 = scmp.ne.s32.totalorder %s146, %s162
      %p164 = scmp.eq.s32.totalorder %s24, 0
      %p165 = por %p163, %p164
      %p166 = scmp.le.s32.totalorder 1, %s18
      %p167 = scmp.lt.s32.totalorder %s18, 3
      %p168 = pnand %p166, %p167
      %p169 = pneg %p168
      // Predicated region
      $region9: #{tpu_custom_call.1} parent=5 // pred_check
        _
      $region10: #{tpu_custom_call.1} parent=5 // pred_check_branch
        %171 = sbr.rel (%p168) target = $region12
      $region11: #{tpu_custom_call.1} parent=5 // pred_region
        %s172 = ssub.s32 %s18, 1
      $region12: #{tpu_custom_call.1} parent=5 // pred_fallthru
        _
      %p173 = scmp.lt.s32.totalorder %s18, 2
      // Predicated region
      $region13: #{tpu_custom_call.1} parent=5 // pred_check
        %p174 = pneg %p173
      $region14: #{tpu_custom_call.1} parent=5 // pred_check_branch
        %176 = sbr.rel (%p174) target = $region16
      $region15: #{tpu_custom_call.1} parent=5 // pred_region
        // Predicated region
        $region17: #{tpu_custom_call.1} parent=15 // pred_check
          %p177 = pneg %p52
        $region18: #{tpu_custom_call.1} parent=15 // pred_check_branch
          %179 = sbr.rel (%p177) target = $region20
        $region19: #{tpu_custom_call.1} parent=15 // pred_region
          %s180 = sand.u32 %s42, 1
          %s181 = scalar_lea.sflag [#allocation3], %s180
          %s182 = sand.u32 %s42, 1
          %s183 = smul.addr %s182, 64
          %s184 = scalar_lea.vmem [#allocation2], %s183
          %s185 = smul.u32 2, %s26
          %s187 = ssub.s32 1024, 1024
          %188 = vsyncadd %s181, %s187
          %s189 = smul.addr %s25, 8
          %s190 = sadd.s32 %s185, %s189
          %s191 = smul.addr %s190, 128
          %s192 = scalar_lea.hbm %s0, %s191
          %s193 = sshll.u32 %s184, 4
          %s194 = int_to_ptr.vmem [resolvable:$true] %s193
          %199 = dma.hbm_to_vmem [thread:$0]  %s192, 1024, %s194, %s181, 128, 128, 8
        $region20: #{tpu_custom_call.1} parent=15 // pred_fallthru
          _
        // Predicated region
        $region21: #{tpu_custom_call.1} parent=15 // pred_check
          %p200 = pneg %p88
        $region22: #{tpu_custom_call.1} parent=15 // pred_check_branch
          %202 = sbr.rel (%p200) target = $region24
        $region23: #{tpu_custom_call.1} parent=15 // pred_region
          %s203 = sand.u32 %s18, 1
          %s204 = scalar_lea.sflag [#allocation6], %s203
          %s205 = sand.u32 %s78, 1
          %s206 = smul.addr %s205, 32
          %s207 = scalar_lea.vmem [#allocation5], %s206
          %s208 = smul.u32 %s26, 2
          %s209 = ssub.s32 %s208, 1
          %p210 = scmp.gt.s32.totalorder %s209, 0
          %s211 = scalar_select %p210, %s209, 0
          %s213 = ssub.s32 512, 512
          %214 = vsyncadd %s204, %s213
          %s215 = smul.addr %s25, 8
          %s216 = sadd.s32 %s211, %s215
          %s217 = smul.addr %s216, 128
          %s218 = scalar_lea.hbm %s1, %s217
          %s219 = sshll.u32 %s207, 4
          %s220 = int_to_ptr.vmem [resolvable:$true] %s219
          %225 = dma.hbm_to_vmem [thread:$0]  %s218, 512, %s220, %s204, 256, 128, 8
        $region24: #{tpu_custom_call.1} parent=15 // pred_fallthru
          _
        // Predicated region
        $region25: #{tpu_custom_call.1} parent=15 // pred_check
          %p226 = pneg %p124
        $region26: #{tpu_custom_call.1} parent=15 // pred_check_branch
          %228 = sbr.rel (%p226) target = $region28
        $region27: #{tpu_custom_call.1} parent=15 // pred_region
          %s229 = sand.u32 %s18, 1
          %s230 = scalar_lea.sflag [#allocation6], %s229
          %s231 = sand.u32 %s114, 1
          %s232 = smul.addr %s231, 32
          %s233 = scalar_lea.vmem [#allocation7], %s232
          %s234 = sadd.s32 %s26, 1
          %s235 = smul.u32 %s234, 2
          %p236 = scmp.lt.s32.totalorder %s235, 1
          %s237 = scalar_select %p236, %s235, 1
          %s239 = ssub.s32 512, 512
          %240 = vsyncadd %s230, %s239
          %s241 = smul.addr %s25, 8
          %s242 = sadd.s32 %s237, %s241
          %s243 = smul.addr %s242, 128
          %s244 = scalar_lea.hbm %s2, %s243
          %s245 = sshll.u32 %s233, 4
          %s246 = int_to_ptr.vmem [resolvable:$true] %s245
          %251 = dma.hbm_to_vmem [thread:$0]  %s244, 512, %s246, %s230, 256, 128, 8
        $region28: #{tpu_custom_call.1} parent=15 // pred_fallthru
          _
      $region16: #{tpu_custom_call.1} parent=5 // pred_fallthru
        _
      %p252 = scmp.le.s32.totalorder 1, %s18
      %p253 = scmp.lt.s32.totalorder %s18, 3
      %p254 = pnand %p252, %p253
      %p255 = pneg %p254
      // Predicated region
      $region29: #{tpu_custom_call.1} parent=5 // pred_check
        _
      $region30: #{tpu_custom_call.1} parent=5 // pred_check_branch
        %257 = sbr.rel (%p254) target = $region32
      $region31: #{tpu_custom_call.1} parent=5 // pred_region
        %s258 = ssub.s32 %s18, 1
        %s259 = sand.u32 %s45, 1
        %s260 = scalar_lea.sflag [#allocation3], %s259
        %s261 = sand.u32 %s45, 1
        %s262 = smul.addr %s261, 64
        %s263 = scalar_lea.vmem [#allocation2], %s262
        // Predicated region
        $region33: #{tpu_custom_call.1} parent=31 // pred_check
          %p264 = pneg %p58
        $region34: #{tpu_custom_call.1} parent=31 // pred_check_branch
          %266 = sbr.rel (%p264) target = $region36
        $region35: #{tpu_custom_call.1} parent=31 // pred_region
          %267 = dma.done %s260, 1024
        $region36: #{tpu_custom_call.1} parent=31 // pred_fallthru
          _
        %s268 = sand.u32 %s23, 1
        %s269 = scalar_lea.sflag [#allocation6], %s268
        %s270 = sand.u32 %s81, 1
        %s271 = smul.addr %s270, 32
        %s272 = scalar_lea.vmem [#allocation5], %s271
        // Predicated region
        $region37: #{tpu_custom_call.1} parent=31 // pred_check
          %p273 = pneg %p94
        $region38: #{tpu_custom_call.1} parent=31 // pred_check_branch
          %275 = sbr.rel (%p273) target = $region40
        $region39: #{tpu_custom_call.1} parent=31 // pred_region
          %276 = dma.done %s269, 512
        $region40: #{tpu_custom_call.1} parent=31 // pred_fallthru
          _
        %s277 = sand.u32 %s23, 1
        %s278 = scalar_lea.sflag [#allocation6], %s277
        %s279 = sand.u32 %s117, 1
        %s280 = smul.addr %s279, 32
        %s281 = scalar_lea.vmem [#allocation7], %s280
        // Predicated region
        $region41: #{tpu_custom_call.1} parent=31 // pred_check
          %p282 = pneg %p130
        $region42: #{tpu_custom_call.1} parent=31 // pred_check_branch
          %284 = sbr.rel (%p282) target = $region44
        $region43: #{tpu_custom_call.1} parent=31 // pred_region
          %285 = dma.done %s278, 512
        $region44: #{tpu_custom_call.1} parent=31 // pred_fallthru
          _
        %s286 = sand.u32 %s45, 1
        %s287 = scalar_lea.sflag [#allocation3], %s286
        %s288 = sand.u32 %s45, 1
        %s289 = smul.addr %s288, 64
        %s290 = scalar_lea.vmem [#allocation2], %s289
        %p291 = pneg %p58
        %p292 = pneg %p55
        %s293 = sand.u32 %s23, 1
        %s294 = scalar_lea.sflag [#allocation6], %s293
        %s295 = sand.u32 %s81, 1
        %s296 = smul.addr %s295, 32
        %s297 = scalar_lea.vmem [#allocation5], %s296
        %p298 = pneg %p94
        %p299 = pneg %p91
        %s300 = sand.u32 %s23, 1
        %s301 = scalar_lea.sflag [#allocation6], %s300
        %s302 = sand.u32 %s117, 1
        %s303 = smul.addr %s302, 32
        %s304 = scalar_lea.vmem [#allocation7], %s303
        %p305 = pneg %p130
        %p306 = pneg %p127
        %p307 = pneg %p158
        %p308 = pneg %p155
        %s309 = sand.u32 %s145, 1
        %s310 = scalar_lea.sflag [#allocation4], %s309
        %s311 = sand.u32 %s145, 1
        %s312 = smul.addr %s311, 64
        %s313 = scalar_lea.vmem [#allocation8], %s312
        %s314 = smul.u32 2, %s28
        %s315 = smul.u32 %s28, 2
        %s316 = ssub.s32 %s315, 1
        %p317 = scmp.gt.s32.totalorder %s316, 0
        %s318 = scalar_select %p317, %s316, 0
        %s319 = sadd.s32 %s28, 1
        %s320 = smul.u32 %s319, 2
        %p321 = scmp.lt.s32.totalorder %s320, 1
        %s322 = scalar_select %p321, %s320, 1
        %s323 = smul.u32 2, %s28
        %v324 = vld [vmem:[%s263] sm:$0xff]
        %v325 = vld [vmem:[%s263 + $0x8] sm:$0xff]
        %v326 = vld [vmem:[%s263 + $0x10] sm:$0xff]
        %v327 = vld [vmem:[%s263 + $0x18] sm:$0xff]
        %v328 = vld [vmem:[%s263 + $0x20] sm:$0xff]
        %v329 = vld [vmem:[%s263 + $0x28] sm:$0xff]
        %v330 = vld [vmem:[%s263 + $0x30] sm:$0xff]
        %v331 = vld [vmem:[%s263 + $0x38] sm:$0xff]
        %v332 = vadd.f32 %v324, %v326
        %v333 = vadd.f32 %v332, %v328
        %v334 = vadd.f32 %v333, %v330
        %v335 = vadd.f32 %v325, %v327
        %v336 = vadd.f32 %v335, %v329
        %v337 = vadd.f32 %v336, %v331
        %v338 = vld [vmem:[%s272 + $0x7] sm:$0x1]
        %v339 = vld [vmem:[%s272 + $0xf] sm:$0x1]
        %v340 = vld [vmem:[%s272 + $0x17] sm:$0x1]
        %v341 = vld [vmem:[%s272 + $0x1f] sm:$0x1]
        %vm342 = vcmask 1040384
        %v343 = vsel %vm342, %v338, 0.0
        %v344 = vsel %vm342, %v339, 0.0
        %v345 = vadd.f32 %v343, %v344
        %v346 = vsel %vm342, %v340, 0.0
        %v347 = vadd.f32 %v345, %v346
        %v348 = vsel %vm342, %v341, 0.0
        %v349 = vadd.f32 %v347, %v348
        %v350 = vld [vmem:[%s281] sm:$0x1]
        %v351 = vld [vmem:[%s281 + $0x8] sm:$0x1]
        %v352 = vld [vmem:[%s281 + $0x10] sm:$0x1]
        %v353 = vld [vmem:[%s281 + $0x18] sm:$0x1]
        %v354 = vsel %vm342, %v350, 0.0
        %v355 = vsel %vm342, %v351, 0.0
        %v356 = vadd.f32 %v354, %v355
        %v357 = vsel %vm342, %v352, 0.0
        %v358 = vadd.f32 %v356, %v357
        %v359 = vsel %vm342, %v353, 0.0
        %v360 = vadd.f32 %v358, %v359
        %p361 = scmp.eq.s32.totalorder %s28, 0
        %s362 = scalar_select %p361, 1, 0
        %v363 = vstv %s362
        %vm364 = vcmp.eq.s32.totalorder %v363, 1
        %v365 = vsel %vm364, 0.0, %v349
        %v366 = vsel %vm364, 0.0, %v360
        %v367 = vlaneseq
        %v368 = vand.u32 %v367, 127
        %vm369 = vcmp.eq.s32.totalorder %v368, 0
        %370 = vrot.lane.b32.xlu0 %v334, 1
        %v371 = vpop.permute.xlu0 %370
        %372 = vrot.lane.b32.xlu0 %v337, 1
        %v373 = vpop.permute.xlu0 %372
        %v374 = vsel %vm369, 0.0, %v371
        %v375 = vsel %vm369, 0.0, %v373
        %vm376 = vcmp.eq.s32.totalorder %v368, 15
        %377 = vrot.lane.b32.xlu0 %v334, 127
        %v378 = vpop.permute.xlu0 %377
        %379 = vrot.lane.b32.xlu0 %v337, 127
        %v380 = vpop.permute.xlu0 %379
        %v381 = vsel %vm376, 0.0, %v378
        %v382 = vsel %vm376, 0.0, %v380
        %v383 = vadd.f32 %v374, %v334
        %v384 = vadd.f32 %v375, %v337
        %v385 = vadd.f32 %v383, %v381
        %v386 = vadd.f32 %v384, %v382
        %387 = vrot.lane.b32.xlu0 %v365, 1
        %v388 = vpop.permute.xlu0 %387
        %v389 = vsel %vm369, 0.0, %v388
        %390 = vrot.lane.b32.xlu0 %v365, 127
        %v391 = vpop.permute.xlu0 %390
        %v392 = vsel %vm376, 0.0, %v391
        %v393 = vadd.f32 %v389, %v365
        %v394 = vadd.f32 %v393, %v392
        %395 = vrot.lane.b32.xlu0 %v366, 1
        %v396 = vpop.permute.xlu0 %395
        %v397 = vsel %vm369, 0.0, %v396
        %398 = vrot.lane.b32.xlu0 %v366, 127
        %v399 = vpop.permute.xlu0 %398
        %v400 = vsel %vm376, 0.0, %v399
        %v401 = vadd.f32 %v397, %v366
        %v402 = vadd.f32 %v401, %v400
        %v403 = vlaneseq
        %v404 = vshrl.u32 %v403, 7
        %v405 = vadd.s32 %v404, 8
        %vm406 = vcmp.eq.s32.totalorder %v404, 0
        %vm407 = vcmp.eq.s32.totalorder %v405, 0
        %v408 = vrot.slane %v385, 7
        %v409 = vrot.slane %v386, 7
        %vm410 = vcmp.lt.s32.totalorder %v404, 1
        %v411 = vsel %vm410, %v408, %v409
        %v412 = vsel %vm410, %v409, %v408
        %v413 = vlaneseq
        %v414 = vshrl.u32 %v413, 7
        %v415 = vsub.s32 0, %v414
        %v416 = vrot.slane %v394, %v415
        %v417 = vsel %vm406, %v416, %v412
        %v418 = vsel %vm407, %v416, %v411
        %vm419 = vcmp.eq.s32.totalorder %v404, 15
        %vm420 = vcmp.eq.s32.totalorder %v405, 15
        %v421 = vrot.slane %v385, 1
        %v422 = vrot.slane %v386, 1
        %vm423 = vcmp.lt.s32.totalorder %v404, 7
        %v424 = vsel %vm423, %v421, %v422
        %v425 = vsel %vm423, %v422, %v421
        %v426 = vlaneseq
        %v427 = vshrl.u32 %v426, 7
        %v428 = vsub.s32 0, %v427
        %v429 = vrot.slane %v402, %v428
        %v430 = vsel %vm419, %v429, %v424
        %v431 = vsel %vm420, %v429, %v425
        %v432 = vadd.f32 %v417, %v385
        %v433 = vadd.f32 %v418, %v386
        %v434 = vadd.f32 %v432, %v430
        %v435 = vadd.f32 %v433, %v431
        %v436 = vmul.f32 %v334, 9.0
        %v437 = vmul.f32 %v337, 9.0
        %v438 = vsub.f32 %v434, %v436
        %v439 = vsub.f32 %v435, %v437
        %440 = vst [vmem:[%s313] sm:$0xff] %v438
        %441 = vst [vmem:[%s313 + $0x8] sm:$0xff] %v439
        %s442 = scalar_lea.vmem %s313, 16 [#allocation8]
        %443 = vst [vmem:[%s442] sm:$0xff] %v438
        %444 = vst [vmem:[%s442 + $0x8] sm:$0xff] %v439
        %s445 = scalar_lea.vmem %s313, 32 [#allocation8]
        %446 = vst [vmem:[%s445] sm:$0xff] %v438
        %447 = vst [vmem:[%s445 + $0x8] sm:$0xff] %v439
        %s448 = scalar_lea.vmem %s313, 48 [#allocation8]
        %449 = vst [vmem:[%s448] sm:$0xff] %v438
        %450 = vst [vmem:[%s448 + $0x8] sm:$0xff] %v439
        %s451 = sand.u32 %s145, 1
        %s452 = scalar_lea.sflag [#allocation4], %s451
        %s453 = sand.u32 %s145, 1
        %s454 = smul.addr %s453, 64
        %s455 = scalar_lea.vmem [#allocation8], %s454
        // Predicated region
        $region45: #{tpu_custom_call.1} parent=31 // pred_check
          %p456 = pneg %p155
        $region46: #{tpu_custom_call.1} parent=31 // pred_check_branch
          %458 = sbr.rel (%p456) target = $region48
        $region47: #{tpu_custom_call.1} parent=31 // pred_region
          %s459 = smul.u32 2, %s28
          %s461 = ssub.s32 1024, 1024
          %462 = vsyncadd %s452, %s461
          %s463 = smul.addr %s27, 8
          %s464 = sadd.s32 %s459, %s463
          %s465 = smul.addr %s464, 128
          %s466 = scalar_lea.hbm %s3, %s465
          %s467 = sshll.u32 %s455, 4
          %s468 = int_to_ptr.vmem [resolvable:$true] %s467
          %473 = dma.vmem_to_hbm [thread:$0]  %s468, 1024, %s466, %s452, 128, 128, 8
        $region48: #{tpu_custom_call.1} parent=31 // pred_fallthru
          _
      $region32: #{tpu_custom_call.1} parent=5 // pred_fallthru
        _
      %p474 = scmp.le.s32.totalorder 2, %s18
      // Predicated region
      $region49: #{tpu_custom_call.1} parent=5 // pred_check
        %p475 = pneg %p474
      $region50: #{tpu_custom_call.1} parent=5 // pred_check_branch
        %477 = sbr.rel (%p475) target = $region52
      $region51: #{tpu_custom_call.1} parent=5 // pred_region
        %s478 = ssub.s32 %s18, 2
        // Predicated region
        $region53: #{tpu_custom_call.1} parent=51 // pred_check
          %p479 = pneg %p161
        $region54: #{tpu_custom_call.1} parent=51 // pred_check_branch
          %481 = sbr.rel (%p479) target = $region56
        $region55: #{tpu_custom_call.1} parent=51 // pred_region
          %s482 = sand.u32 %s146, 1
          %s483 = scalar_lea.sflag [#allocation4], %s482
          %s484 = sand.u32 %s146, 1
          %s485 = smul.addr %s484, 64
          %s486 = scalar_lea.vmem [#allocation8], %s485
          %487 = dma.done %s483, 1024
        $region56: #{tpu_custom_call.1} parent=51 // pred_fallthru
          _
      $region52: #{tpu_custom_call.1} parent=5 // pred_fallthru
        _
    $region6: #{tpu_custom_call.1} parent=1 // loop_footer
      %s22 = sadd.s32 1, %s18
    $region7: #{tpu_custom_call.1} parent=1 // loop_footer_branch
      %17 = sbr.rel target = $region3
    $region8: #{tpu_custom_call.1} parent=1 // loop_exit
      _
    %488 = vsyncpa [#allocation3], 1
    %s489 = scalar_lea.sflag [#allocation3], 1
    %490 = vsyncpa %s489, 1
    %491 = vsyncpa [#allocation6], 1
    %s492 = scalar_lea.sflag [#allocation6], 1
    %493 = vsyncpa %s492, 1
    %494 = vsyncpa [#allocation4], 1
    %s495 = scalar_lea.sflag [#allocation4], 1
    %496 = vsyncpa %s495, 1

</llo_original>
